<compile_context>
chip_gen: v5e
topology: v5e:2x2
jax: 0.10.0
libtpu: 0.0.40
codegen_flags: <defaults>
</compile_context>

<pallas_src>
import numpy as np
import jax
import jax.numpy as jnp
from jax.experimental import pallas as pl
from jax.experimental.pallas import tpu as pltpu

LEAKY_SLOPE = 0.01   # torch.nn.LeakyReLU default negative_slope
BN_EPS = 1e-5        # torch.nn.BatchNorm1d default eps
LANE = 128


def _round_up(n, m=LANE):
    return ((n + m - 1) // m) * m


# ---------------------------------------------------------------------------
# Fused Pallas kernel: whole decoder forward for one batch tile
# ---------------------------------------------------------------------------
def _make_decoder_kernel(n_hidden):
    """Kernel refs layout: (z, w_0, b_0, ..., w_{n-1}, b_{n-1}, w_out, b_out, out)."""
    def kernel(*refs):
        z_ref = refs[0]
        out_ref = refs[-1]
        h = z_ref[...]
        idx = 1
        for _ in range(n_hidden):
            w = refs[idx][...]
            b = refs[idx + 1][...]
            idx += 2
            # Linear (BN already folded into w/b); bf16 weights promote to f32 for the MXU.
            y = jnp.dot(h, w, preferred_element_type=jnp.float32) + b
            # LeakyReLU(0.01): identical to where(y>=0, y, 0.01*y) for slope in (0,1).
            h = jnp.maximum(y, LEAKY_SLOPE * y)
        w = refs[idx][...]
        b = refs[idx + 1][...]
        out_ref[...] = jnp.dot(h, w, preferred_element_type=jnp.float32) + b
    return kernel


def decoder_forward(padded_params, z, output_dim, tile_m=256):
    """z: (B, latent_dim) float32 -> reconstruction (B, output_dim) float32."""
    B, latent_dim = z.shape
    pad_out = padded_params["pad_out"]  # padded (lane-dense) output width

    # Batch tiling: one tile if B is small, otherwise tile_m-row tiles ("parallel" grid).
    if B <= tile_m:
        tm, Bp = B, B
    else:
        tm = tile_m
        Bp = ((B + tm - 1) // tm) * tm
        if Bp != B:
            z = jnp.pad(z, ((0, Bp - B), (0, 0)))

    flat_args = [z]
    for (w, b) in padded_params["hidden"]:
        flat_args += [w, b]
    flat_args += list(padded_params["out"])
    n_hidden = len(padded_params["hidden"])

    def resident(arr):
        # Same block index every grid step -> weight stays VMEM-resident (no re-DMA).
        return pl.BlockSpec(arr.shape, lambda i: (0, 0))

    in_specs = [pl.BlockSpec((tm, latent_dim), lambda i: (i, 0))]   # z streams over batch
    in_specs += [resident(a) for a in flat_args[1:]]

    out_padded = pl.pallas_call(
        _make_decoder_kernel(n_hidden),
        grid=(Bp // tm,),
        in_specs=in_specs,
        # Keep the output block lane-dense at pad_out (unmasked vst); slice outside.
        out_specs=pl.BlockSpec((tm, pad_out), lambda i: (i, 0)),
        out_shape=jax.ShapeDtypeStruct((Bp, pad_out), jnp.float32),
        compiler_params=pltpu.CompilerParams(dimension_semantics=("parallel",)),
    )(*flat_args)

    return out_padded[:B, :output_dim]


# ---------------------------------------------------------------------------
# Parameter construction (mirrors Decoder.__init__) + BN folding + lane padding
# ---------------------------------------------------------------------------
def _linear_params(key, din, dout):
    kw, kb = jax.random.split(key)
    bound = 1.0 / np.sqrt(din)
    # weight stored pre-transposed: (in_features, out_features), so y = x @ W + b
    w = jax.random.uniform(kw, (din, dout), jnp.float32, -bound, bound)
    b = jax.random.uniform(kb, (dout,), jnp.float32, -bound, bound)
    return w, b


def _bn_params(key, dout):
    kg, kb, km, kv = jax.random.split(key, 4)
    gamma = jax.random.uniform(kg, (dout,), jnp.float32, 0.5, 1.5)
    beta = jax.random.uniform(kb, (dout,), jnp.float32, -0.5, 0.5)
    rm = jax.random.uniform(km, (dout,), jnp.float32, -0.2, 0.2)   # running_mean
    rv = jax.random.uniform(kv, (dout,), jnp.float32, 0.5, 1.5)    # running_var (>0)
    return gamma, beta, rm, rv


def init_decoder_raw_params(key, dim_list):
    """Raw (un-folded, un-padded) params mirroring the PyTorch Decoder layout."""
    params = {"hidden": [], "dim_list": list(dim_list)}
    for (din, dout) in dim_list[:-1]:
        key, k1, k2 = jax.random.split(key, 3)
        params["hidden"].append(_linear_params(k1, din, dout) + _bn_params(k2, dout))
    key, kout = jax.random.split(key)
    din, dout = dim_list[-1]
    params["out"] = _linear_params(kout, din, dout)
    return params


def fold_and_pad_params(raw, weight_dtype=jnp.float32):
    """Fold eval-mode BN into W/b; zero-pad output widths (and chained K dims) to 128 lanes.

    The first layer's K dim stays at latent_dim (z is passed un-padded).  Weights may be
    stored in bfloat16 (v6e/v7x VMEM/DMA optimization); biases stay f32.
    """
    dim_list = raw["dim_list"]
    padded = {"hidden": [], "pad_out": _round_up(dim_list[-1][1])}

    prev_padded = dim_list[0][0]          # un-padded latent width
    for (din, dout), (w, b, gamma, beta, rm, rv) in zip(dim_list[:-1], raw["hidden"]):
        scale = gamma * jax.lax.rsqrt(rv + BN_EPS)
        w_f = w * scale[None, :]
        b_f = (b - rm) * scale + beta
        pi, po = prev_padded, _round_up(dout)
        wp = jnp.zeros((pi, po), jnp.float32).at[:din, :dout].set(w_f).astype(weight_dtype)
        bp = jnp.zeros((1, po), jnp.float32).at[0, :dout].set(b_f)
        padded["hidden"].append((wp, bp))
        prev_padded = po

    din, dout = dim_list[-1]
    w, b = raw["out"]
    pi, po = prev_padded, _round_up(dout)
    wp = jnp.zeros((pi, po), jnp.float32).at[:din, :dout].set(w).astype(weight_dtype)
    bp = jnp.zeros((1, po), jnp.float32).at[0, :dout].set(b)
    padded["out"] = (wp, bp)
    return padded


# ---------------------------------------------------------------------------
# Pure-JAX reference (unfused, BN not folded) for verification
# ---------------------------------------------------------------------------
def decoder_reference(raw, z):
    h = z
    for (w, b, gamma, beta, rm, rv) in raw["hidden"]:
        y = h @ w + b
        y = (y - rm) * jax.lax.rsqrt(rv + BN_EPS) * gamma + beta
        h = jnp.where(y >= 0.0, y, LEAKY_SLOPE * y)
    w, b = raw["out"]
    return h @ w + b


# ---------------------------------------------------------------------------
if __name__ == "__main__":
    key = jax.random.PRNGKey(0)
    k_params, k_z = jax.random.split(key)

    # dim_list: latent -> hidden widths -> output (as the VAE would build its decoder)
    LATENT_DIM, OUTPUT_DIM, BATCH = 10, 30, 512
    dim_list = [(10, 28), (28, 46), (46, 64), (64, 30)]

    raw_params = init_decoder_raw_params(k_params, dim_list)
    z = jax.random.normal(k_z, (BATCH, LATENT_DIM), dtype=jnp.float32)

    ref = jax.block_until_ready(decoder_reference(raw_params, z))

    # --- f32 weights (default) ---
    params_f32 = fold_and_pad_params(raw_params, weight_dtype=jnp.float32)
    recon = decoder_forward(params_f32, z, OUTPUT_DIM, tile_m=256)
    recon = jax.block_until_ready(recon)
    assert recon.shape == (BATCH, OUTPUT_DIM)
    np.testing.assert_allclose(np.asarray(recon), np.asarray(ref), rtol=2e-2, atol=2e-2)

    # --- bf16-stored weights (v6e/v7x VMEM/DMA optimization; activations stay f32) ---
    params_bf16 = fold_and_pad_params(raw_params, weight_dtype=jnp.bfloat16)
    recon_bf16 = decoder_forward(params_bf16, z, OUTPUT_DIM, tile_m=256)
    recon_bf16 = jax.block_until_ready(recon_bf16)
    assert recon_bf16.shape == (BATCH, OUTPUT_DIM)
    np.testing.assert_allclose(np.asarray(recon_bf16), np.asarray(ref), rtol=3e-2, atol=3e-2)

    print("KERNEL_OK")
</pallas_src>

<mosaic_0001>
module attributes {stable_mosaic.version = 11 : i64} {
  func.func @kernel(%arg0: i32, %arg1: memref<256x10xf32, #tpu.memory_space<vmem>>, %arg2: memref<10x128xf32, #tpu.memory_space<vmem>>, %arg3: memref<1x128xf32, #tpu.memory_space<vmem>>, %arg4: memref<128x128xf32, #tpu.memory_space<vmem>>, %arg5: memref<1x128xf32, #tpu.memory_space<vmem>>, %arg6: memref<128x128xf32, #tpu.memory_space<vmem>>, %arg7: memref<1x128xf32, #tpu.memory_space<vmem>>, %arg8: memref<128x128xf32, #tpu.memory_space<vmem>>, %arg9: memref<1x128xf32, #tpu.memory_space<vmem>>, %arg10: memref<256x128xf32, #tpu.memory_space<vmem>>) attributes {dimension_semantics = [#tpu.dimension_semantics<parallel>], iteration_bounds = array<i64: 2>, scalar_prefetch = 0 : i64, scratch_operands = 0 : i64, tpu.core_type = #tpu.core_type<tc>, window_params = [{transform_indices = @transform_0, window_bounds = array<i64: 256, 10>}, {pipeline_mode = #tpu.pipeline_mode<synchronous>, transform_indices = @transform_1, window_bounds = array<i64: 10, 128>}, {pipeline_mode = #tpu.pipeline_mode<synchronous>, transform_indices = @transform_2, window_bounds = array<i64: 1, 128>}, {pipeline_mode = #tpu.pipeline_mode<synchronous>, transform_indices = @transform_3, window_bounds = array<i64: 128, 128>}, {pipeline_mode = #tpu.pipeline_mode<synchronous>, transform_indices = @transform_4, window_bounds = array<i64: 1, 128>}, {pipeline_mode = #tpu.pipeline_mode<synchronous>, transform_indices = @transform_5, window_bounds = array<i64: 128, 128>}, {pipeline_mode = #tpu.pipeline_mode<synchronous>, transform_indices = @transform_6, window_bounds = array<i64: 1, 128>}, {pipeline_mode = #tpu.pipeline_mode<synchronous>, transform_indices = @transform_7, window_bounds = array<i64: 128, 128>}, {pipeline_mode = #tpu.pipeline_mode<synchronous>, transform_indices = @transform_8, window_bounds = array<i64: 1, 128>}, {transform_indices = @transform_9, window_bounds = array<i64: 256, 128>}]} {
    %c0 = arith.constant 0 : index
    %c0_0 = arith.constant 0 : index
    %0 = vector.load %arg1[%c0, %c0_0] : memref<256x10xf32, #tpu.memory_space<vmem>>, vector<256x10xf32>
    %c0_1 = arith.constant 0 : index
    %c0_2 = arith.constant 0 : index
    %1 = vector.load %arg2[%c0_1, %c0_2] : memref<10x128xf32, #tpu.memory_space<vmem>>, vector<10x128xf32>
    %c0_3 = arith.constant 0 : index
    %c0_4 = arith.constant 0 : index
    %2 = vector.load %arg3[%c0_3, %c0_4] : memref<1x128xf32, #tpu.memory_space<vmem>>, vector<1x128xf32>
    %cst = arith.constant dense<0.000000e+00> : vector<256x128xf32>
    %3 = tpu.matmul %0, %1, %cst {dimension_numbers = #tpu.dot_dimension_numbers<[1], [0], [0], [1], [0, 0, 1, 1], [], []>} : vector<256x10xf32>, vector<10x128xf32>, vector<256x128xf32> -> vector<256x128xf32>
    %4 = vector.broadcast %2 : vector<1x128xf32> to vector<256x128xf32>
    %5 = arith.addf %3, %4 : vector<256x128xf32>
    %cst_5 = arith.constant 0.00999999977 : f32
    %6 = vector.broadcast %cst_5 : f32 to vector<256x128xf32>
    %7 = arith.mulf %6, %5 : vector<256x128xf32>
    %8 = arith.maximumf %5, %7 : vector<256x128xf32>
    %c0_6 = arith.constant 0 : index
    %c0_7 = arith.constant 0 : index
    %9 = vector.load %arg4[%c0_6, %c0_7] : memref<128x128xf32, #tpu.memory_space<vmem>>, vector<128x128xf32>
    %c0_8 = arith.constant 0 : index
    %c0_9 = arith.constant 0 : index
    %10 = vector.load %arg5[%c0_8, %c0_9] : memref<1x128xf32, #tpu.memory_space<vmem>>, vector<1x128xf32>
    %cst_10 = arith.constant dense<0.000000e+00> : vector<256x128xf32>
    %11 = tpu.matmul %8, %9, %cst_10 {dimension_numbers = #tpu.dot_dimension_numbers<[1], [0], [0], [1], [0, 0, 1, 1], [], []>} : vector<256x128xf32>, vector<128x128xf32>, vector<256x128xf32> -> vector<256x128xf32>
    %12 = vector.broadcast %10 : vector<1x128xf32> to vector<256x128xf32>
    %13 = arith.addf %11, %12 : vector<256x128xf32>
    %cst_11 = arith.constant 0.00999999977 : f32
    %14 = vector.broadcast %cst_11 : f32 to vector<256x128xf32>
    %15 = arith.mulf %14, %13 : vector<256x128xf32>
    %16 = arith.maximumf %13, %15 : vector<256x128xf32>
    %c0_12 = arith.constant 0 : index
    %c0_13 = arith.constant 0 : index
    %17 = vector.load %arg6[%c0_12, %c0_13] : memref<128x128xf32, #tpu.memory_space<vmem>>, vector<128x128xf32>
    %c0_14 = arith.constant 0 : index
    %c0_15 = arith.constant 0 : index
    %18 = vector.load %arg7[%c0_14, %c0_15] : memref<1x128xf32, #tpu.memory_space<vmem>>, vector<1x128xf32>
    %cst_16 = arith.constant dense<0.000000e+00> : vector<256x128xf32>
    %19 = tpu.matmul %16, %17, %cst_16 {dimension_numbers = #tpu.dot_dimension_numbers<[1], [0], [0], [1], [0, 0, 1, 1], [], []>} : vector<256x128xf32>, vector<128x128xf32>, vector<256x128xf32> -> vector<256x128xf32>
    %20 = vector.broadcast %18 : vector<1x128xf32> to vector<256x128xf32>
    %21 = arith.addf %19, %20 : vector<256x128xf32>
    %cst_17 = arith.constant 0.00999999977 : f32
    %22 = vector.broadcast %cst_17 : f32 to vector<256x128xf32>
    %23 = arith.mulf %22, %21 : vector<256x128xf32>
    %24 = arith.maximumf %21, %23 : vector<256x128xf32>
    %c0_18 = arith.constant 0 : index
    %c0_19 = arith.constant 0 : index
    %25 = vector.load %arg8[%c0_18, %c0_19] : memref<128x128xf32, #tpu.memory_space<vmem>>, vector<128x128xf32>
    %c0_20 = arith.constant 0 : index
    %c0_21 = arith.constant 0 : index
    %26 = vector.load %arg9[%c0_20, %c0_21] : memref<1x128xf32, #tpu.memory_space<vmem>>, vector<1x128xf32>
    %cst_22 = arith.constant dense<0.000000e+00> : vector<256x128xf32>
    %27 = tpu.matmul %24, %25, %cst_22 {dimension_numbers = #tpu.dot_dimension_numbers<[1], [0], [0], [1], [0, 0, 1, 1], [], []>} : vector<256x128xf32>, vector<128x128xf32>, vector<256x128xf32> -> vector<256x128xf32>
    %28 = vector.broadcast %26 : vector<1x128xf32> to vector<256x128xf32>
    %29 = arith.addf %27, %28 : vector<256x128xf32>
    %c0_23 = arith.constant 0 : index
    %c0_24 = arith.constant 0 : index
    %30 = vector.load %arg10[%c0_23, %c0_24] : memref<256x128xf32, #tpu.memory_space<vmem>>, vector<256x128xf32>
    tpu.vector_store %arg10[%c0_23, %c0_24], %29 {strides = array<i32>} : memref<256x128xf32, #tpu.memory_space<vmem>>, vector<256x128xf32>,
    return
  }
  func.func @transform_0(%arg0: i32) -> (i32, i32) {
    %c0_i32 = arith.constant 0 : i32
    %c0_i32_0 = arith.constant 0 : i32
    return %arg0, %c0_i32 : i32, i32
  }
  func.func @transform_1(%arg0: i32) -> (i32, i32) {
    %c0_i32 = arith.constant 0 : i32
    %c0_i32_0 = arith.constant 0 : i32
    %c0_i32_1 = arith.constant 0 : i32
    return %c0_i32, %c0_i32_0 : i32, i32
  }
  func.func @transform_2(%arg0: i32) -> (i32, i32) {
    %c0_i32 = arith.constant 0 : i32
    %c0_i32_0 = arith.constant 0 : i32
    %c0_i32_1 = arith.constant 0 : i32
    return %c0_i32, %c0_i32_0 : i32, i32
  }
  func.func @transform_3(%arg0: i32) -> (i32, i32) {
    %c0_i32 = arith.constant 0 : i32
    %c0_i32_0 = arith.constant 0 : i32
    %c0_i32_1 = arith.constant 0 : i32
    return %c0_i32, %c0_i32_0 : i32, i32
  }
  func.func @transform_4(%arg0: i32) -> (i32, i32) {
    %c0_i32 = arith.constant 0 : i32
    %c0_i32_0 = arith.constant 0 : i32
    %c0_i32_1 = arith.constant 0 : i32
    return %c0_i32, %c0_i32_0 : i32, i32
  }
  func.func @transform_5(%arg0: i32) -> (i32, i32) {
    %c0_i32 = arith.constant 0 : i32
    %c0_i32_0 = arith.constant 0 : i32
    %c0_i32_1 = arith.constant 0 : i32
    return %c0_i32, %c0_i32_0 : i32, i32
  }
  func.func @transform_6(%arg0: i32) -> (i32, i32) {
    %c0_i32 = arith.constant 0 : i32
    %c0_i32_0 = arith.constant 0 : i32
    %c0_i32_1 = arith.constant 0 : i32
    return %c0_i32, %c0_i32_0 : i32, i32
  }
  func.func @transform_7(%arg0: i32) -> (i32, i32) {
    %c0_i32 = arith.constant 0 : i32
    %c0_i32_0 = arith.constant 0 : i32
    %c0_i32_1 = arith.constant 0 : i32
    return %c0_i32, %c0_i32_0 : i32, i32
  }
  func.func @transform_8(%arg0: i32) -> (i32, i32) {
    %c0_i32 = arith.constant 0 : i32
    %c0_i32_0 = arith.constant 0 : i32
    %c0_i32_1 = arith.constant 0 : i32
    return %c0_i32, %c0_i32_0 : i32, i32
  }
  func.func @transform_9(%arg0: i32) -> (i32, i32) {
    %c0_i32 = arith.constant 0 : i32
    %c0_i32_0 = arith.constant 0 : i32
    return %arg0, %c0_i32 : i32, i32
  }
}

</mosaic_0001>

<llo_original>
// kernel: tpu_custom_call.1
$region0: #{tpu_custom_call.1}
  #allocation0 [shape = 'u32[]', space=smem, size = 0x4, offset = 0x4, fixed_abs, tag = 'smem constant byte address 0x4 - core index']
  #allocation1 [shape = 'u32[72,128]{1,0:T(1,128)}', space=vmem, size = 0x9000, scoped, tag = 'internal scratch']
  %s0 = inlined_call_operand.vmem [shape: f32[512,10], index: 0, kind: input, shape index: {}]
  %s1 = inlined_call_operand.vmem [shape: f32[10,128], index: 1, kind: input, shape index: {}]
  %s2 = inlined_call_operand.vmem [shape: f32[1,128], index: 2, kind: input, shape index: {}]
  %s3 = inlined_call_operand.vmem [shape: f32[128,128], index: 3, kind: input, shape index: {}]
  %s4 = inlined_call_operand.vmem [shape: f32[1,128], index: 4, kind: input, shape index: {}]
  %s5 = inlined_call_operand.vmem [shape: f32[128,128], index: 5, kind: input, shape index: {}]
  %s6 = inlined_call_operand.vmem [shape: f32[1,128], index: 6, kind: input, shape index: {}]
  %s7 = inlined_call_operand.vmem [shape: f32[128,128], index: 7, kind: input, shape index: {}]
  %s8 = inlined_call_operand.vmem [shape: f32[1,128], index: 8, kind: input, shape index: {}]
  %s9 = inlined_call_operand.hbm [shape: f32[512,128], index: 9, kind: output, shape index: {}]
  %s10 = sld [smem:[#allocation0]]
  $region69: #{tpu_custom_call.1} parent=0
    _
  %s12 = ssub.s32 1, %s10
  %s13 = scalar_select 0, %s12, %s10
  $region1: #{tpu_custom_call.1} parent=0
    #allocation2 [shape = 'u8[262144]{0}', space=vmem, size = 0x40000, scoped, tag = 'output window, operand 0']
    #allocation3 [shape = 's32[2]{0}', space=sflag, size = 0x8, scoped, tag = 'scoped memory for tpu_custom_call.1']
    %14 = vsyncpa [#allocation3], 0
    %s15 = scalar_lea.sflag [#allocation3], 1
    %16 = vsyncpa %s15, 0
    loop: start=0, step=1, limit=4
    $region2: #{tpu_custom_call.1} parent=1 // loop_pre_header
      _
    $region3: #{tpu_custom_call.1} parent=1 // loop_header
      %s18 = sphi 0, %s22
      %p19 = scmp.ge.s32.totalorder %s18, 4
      %s28 = sphi 0, %s30
      %s31 = sphi 0, %s28
      %s32 = sphi 0, %s31
      %s48 = sphi 0, %s32
      %s52 = sphi 0, %s52
      %s54 = sphi 0, %s52
      %s55 = sphi 0, %s54
      %s69 = sphi 0, %s55
      %s73 = sphi 0, %s73
      %s75 = sphi 0, %s73
      %s76 = sphi 0, %s75
      %s90 = sphi 0, %s76
      %s94 = sphi 0, %s94
      %s96 = sphi 0, %s94
      %s97 = sphi 0, %s96
      %s111 = sphi 0, %s97
      %s115 = sphi 0, %s115
      %s117 = sphi 0, %s115
      %s118 = sphi 0, %s117
      %s132 = sphi 0, %s118
      %s136 = sphi 0, %s136
      %s138 = sphi 0, %s136
      %s139 = sphi 0, %s138
      %s153 = sphi 0, %s139
      %s157 = sphi 0, %s157
      %s159 = sphi 0, %s157
      %s160 = sphi 0, %s159
      %s174 = sphi 0, %s160
      %s178 = sphi 0, %s178
      %s180 = sphi 0, %s178
      %s181 = sphi 0, %s180
      %s195 = sphi 0, %s181
      %s199 = sphi 0, %s199
      %s201 = sphi 0, %s199
      %s202 = sphi 0, %s201
      %s216 = sphi 0, %s202
      %s222 = sphi 0, %s224
      %s225 = sphi 0, %s222
      %s226 = sphi 0, %s225
      %s242 = sphi 0, %s226
    $region4: #{tpu_custom_call.1} parent=1 // loop_header_branch
      %21 = sbr.rel (%p19) target = $region8
    $region5: #{tpu_custom_call.1} parent=1 // loop_body
      %s23 = ssub.s32 %s18, 1
      %s24 = ssub.s32 %s18, 2
      %s25 = sadd.s32 %s18, 1
      %s26 = ssub.s32 %s18, %s25
      %p27 = scmp.eq.s32.totalorder %s26, 0
      %s29 = sadd.s32 %s28, 1
      %s30 = scalar_select %p27, %s28, %s29
      %p33 = pneg %p27
      %p34 = scmp.eq.s32.totalorder %s18, 1
      %p35 = por %p33, %p34
      %p36 = scmp.ne.s32.totalorder %s28, %s31
      %p37 = scmp.eq.s32.totalorder %s18, 0
      %p38 = por %p36, %p37
      %p39 = scmp.ne.s32.totalorder %s28, %s31
      %p40 = scmp.eq.s32.totalorder %s23, 1
      %p41 = por %p39, %p40
      %p42 = scmp.ne.s32.totalorder %s31, %s32
      %p43 = scmp.eq.s32.totalorder %s23, 0
      %p44 = por %p42, %p43
      %p45 = scmp.ne.s32.totalorder %s31, %s32
      %p46 = scmp.eq.s32.totalorder %s24, 1
      %p47 = por %p45, %p46
      %p49 = scmp.ne.s32.totalorder %s32, %s48
      %p50 = scmp.eq.s32.totalorder %s24, 0
      %p51 = por %p49, %p50
      %s53 = sadd.s32 %s52, 1
      %p56 = scmp.eq.s32.totalorder %s18, 1
      %p57 = scmp.ne.s32.totalorder %s52, %s54
      %p58 = scmp.eq.s32.totalorder %s18, 0
      %p59 = por %p57, %p58
      %p60 = scmp.ne.s32.totalorder %s52, %s54
      %p61 = scmp.eq.s32.totalorder %s23, 1
      %p62 = por %p60, %p61
      %p63 = scmp.ne.s32.totalorder %s54, %s55
      %p64 = scmp.eq.s32.totalorder %s23, 0
      %p65 = por %p63, %p64
      %p66 = scmp.ne.s32.totalorder %s54, %s55
      %p67 = scmp.eq.s32.totalorder %s24, 1
      %p68 = por %p66, %p67
      %p70 = scmp.ne.s32.totalorder %s55, %s69
      %p71 = scmp.eq.s32.totalorder %s24, 0
      %p72 = por %p70, %p71
      %s74 = sadd.s32 %s73, 1
      %p77 = scmp.eq.s32.totalorder %s18, 1
      %p78 = scmp.ne.s32.totalorder %s73, %s75
      %p79 = scmp.eq.s32.totalorder %s18, 0
      %p80 = por %p78, %p79
      %p81 = scmp.ne.s32.totalorder %s73, %s75
      %p82 = scmp.eq.s32.totalorder %s23, 1
      %p83 = por %p81, %p82
      %p84 = scmp.ne.s32.totalorder %s75, %s76
      %p85 = scmp.eq.s32.totalorder %s23, 0
      %p86 = por %p84, %p85
      %p87 = scmp.ne.s32.totalorder %s75, %s76
      %p88 = scmp.eq.s32.totalorder %s24, 1
      %p89 = por %p87, %p88
      %p91 = scmp.ne.s32.totalorder %s76, %s90
      %p92 = scmp.eq.s32.totalorder %s24, 0
      %p93 = por %p91, %p92
      %s95 = sadd.s32 %s94, 1
      %p98 = scmp.eq.s32.totalorder %s18, 1
      %p99 = scmp.ne.s32.totalorder %s94, %s96
      %p100 = scmp.eq.s32.totalorder %s18, 0
      %p101 = por %p99, %p100
      %p102 = scmp.ne.s32.totalorder %s94, %s96
      %p103 = scmp.eq.s32.totalorder %s23, 1
      %p104 = por %p102, %p103
      %p105 = scmp.ne.s32.totalorder %s96, %s97
      %p106 = scmp.eq.s32.totalorder %s23, 0
      %p107 = por %p105, %p106
      %p108 = scmp.ne.s32.totalorder %s96, %s97
      %p109 = scmp.eq.s32.totalorder %s24, 1
      %p110 = por %p108, %p109
      %p112 = scmp.ne.s32.totalorder %s97, %s111
      %p113 = scmp.eq.s32.totalorder %s24, 0
      %p114 = por %p112, %p113
      %s116 = sadd.s32 %s115, 1
      %p119 = scmp.eq.s32.totalorder %s18, 1
      %p120 = scmp.ne.s32.totalorder %s115, %s117
      %p121 = scmp.eq.s32.totalorder %s18, 0
      %p122 = por %p120, %p121
      %p123 = scmp.ne.s32.totalorder %s115, %s117
      %p124 = scmp.eq.s32.totalorder %s23, 1
      %p125 = por %p123, %p124
      %p126 = scmp.ne.s32.totalorder %s117, %s118
      %p127 = scmp.eq.s32.totalorder %s23, 0
      %p128 = por %p126, %p127
      %p129 = scmp.ne.s32.totalorder %s117, %s118
      %p130 = scmp.eq.s32.totalorder %s24, 1
      %p131 = por %p129, %p130
      %p133 = scmp.ne.s32.totalorder %s118, %s132
      %p134 = scmp.eq.s32.totalorder %s24, 0
      %p135 = por %p133, %p134
      %s137 = sadd.s32 %s136, 1
      %p140 = scmp.eq.s32.totalorder %s18, 1
      %p141 = scmp.ne.s32.totalorder %s136, %s138
      %p142 = scmp.eq.s32.totalorder %s18, 0
      %p143 = por %p141, %p142
      %p144 = scmp.ne.s32.totalorder %s136, %s138
      %p145 = scmp.eq.s32.totalorder %s23, 1
      %p146 = por %p144, %p145
      %p147 = scmp.ne.s32.totalorder %s138, %s139
      %p148 = scmp.eq.s32.totalorder %s23, 0
      %p149 = por %p147, %p148
      %p150 = scmp.ne.s32.totalorder %s138, %s139
      %p151 = scmp.eq.s32.totalorder %s24, 1
      %p152 = por %p150, %p151
      %p154 = scmp.ne.s32.totalorder %s139, %s153
      %p155 = scmp.eq.s32.totalorder %s24, 0
      %p156 = por %p154, %p155
      %s158 = sadd.s32 %s157, 1
      %p161 = scmp.eq.s32.totalorder %s18, 1
      %p162 = scmp.ne.s32.totalorder %s157, %s159
      %p163 = scmp.eq.s32.totalorder %s18, 0
      %p164 = por %p162, %p163
      %p165 = scmp.ne.s32.totalorder %s157, %s159
      %p166 = scmp.eq.s32.totalorder %s23, 1
      %p167 = por %p165, %p166
      %p168 = scmp.ne.s32.totalorder %s159, %s160
      %p169 = scmp.eq.s32.totalorder %s23, 0
      %p170 = por %p168, %p169
      %p171 = scmp.ne.s32.totalorder %s159, %s160
      %p172 = scmp.eq.s32.totalorder %s24, 1
      %p173 = por %p171, %p172
      %p175 = scmp.ne.s32.totalorder %s160, %s174
      %p176 = scmp.eq.s32.totalorder %s24, 0
      %p177 = por %p175, %p176
      %s179 = sadd.s32 %s178, 1
      %p182 = scmp.eq.s32.totalorder %s18, 1
      %p183 = scmp.ne.s32.totalorder %s178, %s180
      %p184 = scmp.eq.s32.totalorder %s18, 0
      %p185 = por %p183, %p184
      %p186 = scmp.ne.s32.totalorder %s178, %s180
      %p187 = scmp.eq.s32.totalorder %s23, 1
      %p188 = por %p186, %p187
      %p189 = scmp.ne.s32.totalorder %s180, %s181
      %p190 = scmp.eq.s32.totalorder %s23, 0
      %p191 = por %p189, %p190
      %p192 = scmp.ne.s32.totalorder %s180, %s181
      %p193 = scmp.eq.s32.totalorder %s24, 1
      %p194 = por %p192, %p193
      %p196 = scmp.ne.s32.totalorder %s181, %s195
      %p197 = scmp.eq.s32.totalorder %s24, 0
      %p198 = por %p196, %p197
      %s200 = sadd.s32 %s199, 1
      %p203 = scmp.eq.s32.totalorder %s18, 1
      %p204 = scmp.ne.s32.totalorder %s199, %s201
      %p205 = scmp.eq.s32.totalorder %s18, 0
      %p206 = por %p204, %p205
      %p207 = scmp.ne.s32.totalorder %s199, %s201
      %p208 = scmp.eq.s32.totalorder %s23, 1
      %p209 = por %p207, %p208
      %p210 = scmp.ne.s32.totalorder %s201, %s202
      %p211 = scmp.eq.s32.totalorder %s23, 0
      %p212 = por %p210, %p211
      %p213 = scmp.ne.s32.totalorder %s201, %s202
      %p214 = scmp.eq.s32.totalorder %s24, 1
      %p215 = por %p213, %p214
      %p217 = scmp.ne.s32.totalorder %s202, %s216
      %p218 = scmp.eq.s32.totalorder %s24, 0
      %p219 = por %p217, %p218
      %s220 = ssub.s32 %s18, %s25
      %p221 = scmp.eq.s32.totalorder %s220, 0
      %s223 = sadd.s32 %s222, 1
      %s224 = scalar_select %p221, %s222, %s223
      %p227 = pneg %p221
      %p228 = scmp.eq.s32.totalorder %s18, 1
      %p229 = por %p227, %p228
      %p230 = scmp.ne.s32.totalorder %s222, %s225
      %p231 = scmp.eq.s32.totalorder %s18, 0
      %p232 = por %p230, %p231
      %p233 = scmp.ne.s32.totalorder %s222, %s225
      %p234 = scmp.eq.s32.totalorder %s23, 1
      %p235 = por %p233, %p234
      %p236 = scmp.ne.s32.totalorder %s225, %s226
      %p237 = scmp.eq.s32.totalorder %s23, 0
      %p238 = por %p236, %p237
      %p239 = scmp.ne.s32.totalorder %s225, %s226
      %p240 = scmp.eq.s32.totalorder %s24, 1
      %p241 = por %p239, %p240
      %p243 = scmp.ne.s32.totalorder %s226, %s242
      %p244 = scmp.eq.s32.totalorder %s24, 0
      %p245 = por %p243, %p244
      %p246 = scmp.le.s32.totalorder 1, %s18
      %p247 = scmp.lt.s32.totalorder %s18, 3
      %p248 = pnand %p246, %p247
      %p249 = pneg %p248
      // Predicated region
      $region9: #{tpu_custom_call.1} parent=5 // pred_check
        _
      $region10: #{tpu_custom_call.1} parent=5 // pred_check_branch
        %251 = sbr.rel (%p248) target = $region12
      $region11: #{tpu_custom_call.1} parent=5 // pred_region
        %s252 = ssub.s32 %s18, 1
        // Predicated region
        $region13: #{tpu_custom_call.1} parent=11 // pred_check
          %p253 = pneg %p65
        $region14: #{tpu_custom_call.1} parent=11 // pred_check_branch
          %255 = sbr.rel (%p253) target = $region16
        $region15: #{tpu_custom_call.1} parent=11 // pred_region
          _
        $region16: #{tpu_custom_call.1} parent=11 // pred_fallthru
          _
        // Predicated region
        $region17: #{tpu_custom_call.1} parent=11 // pred_check
          %p256 = pneg %p86
        $region18: #{tpu_custom_call.1} parent=11 // pred_check_branch
          %258 = sbr.rel (%p256) target = $region20
        $region19: #{tpu_custom_call.1} parent=11 // pred_region
          _
        $region20: #{tpu_custom_call.1} parent=11 // pred_fallthru
          _
        // Predicated region
        $region21: #{tpu_custom_call.1} parent=11 // pred_check
          %p259 = pneg %p107
        $region22: #{tpu_custom_call.1} parent=11 // pred_check_branch
          %261 = sbr.rel (%p259) target = $region24
        $region23: #{tpu_custom_call.1} parent=11 // pred_region
          _
        $region24: #{tpu_custom_call.1} parent=11 // pred_fallthru
          _
        // Predicated region
        $region25: #{tpu_custom_call.1} parent=11 // pred_check
          %p262 = pneg %p128
        $region26: #{tpu_custom_call.1} parent=11 // pred_check_branch
          %264 = sbr.rel (%p262) target = $region28
        $region27: #{tpu_custom_call.1} parent=11 // pred_region
          _
        $region28: #{tpu_custom_call.1} parent=11 // pred_fallthru
          _
        // Predicated region
        $region29: #{tpu_custom_call.1} parent=11 // pred_check
          %p265 = pneg %p149
        $region30: #{tpu_custom_call.1} parent=11 // pred_check_branch
          %267 = sbr.rel (%p265) target = $region32
        $region31: #{tpu_custom_call.1} parent=11 // pred_region
          _
        $region32: #{tpu_custom_call.1} parent=11 // pred_fallthru
          _
        // Predicated region
        $region33: #{tpu_custom_call.1} parent=11 // pred_check
          %p268 = pneg %p170
        $region34: #{tpu_custom_call.1} parent=11 // pred_check_branch
          %270 = sbr.rel (%p268) target = $region36
        $region35: #{tpu_custom_call.1} parent=11 // pred_region
          _
        $region36: #{tpu_custom_call.1} parent=11 // pred_fallthru
          _
        // Predicated region
        $region37: #{tpu_custom_call.1} parent=11 // pred_check
          %p271 = pneg %p191
        $region38: #{tpu_custom_call.1} parent=11 // pred_check_branch
          %273 = sbr.rel (%p271) target = $region40
        $region39: #{tpu_custom_call.1} parent=11 // pred_region
          _
        $region40: #{tpu_custom_call.1} parent=11 // pred_fallthru
          _
        // Predicated region
        $region41: #{tpu_custom_call.1} parent=11 // pred_check
          %p274 = pneg %p212
        $region42: #{tpu_custom_call.1} parent=11 // pred_check_branch
          %276 = sbr.rel (%p274) target = $region44
        $region43: #{tpu_custom_call.1} parent=11 // pred_region
          _
        $region44: #{tpu_custom_call.1} parent=11 // pred_fallthru
          _
      $region12: #{tpu_custom_call.1} parent=5 // pred_fallthru
        _
      %p277 = scmp.lt.s32.totalorder %s18, 2
      // Predicated region
      $region45: #{tpu_custom_call.1} parent=5 // pred_check
        %p278 = pneg %p277
      $region46: #{tpu_custom_call.1} parent=5 // pred_check_branch
        %280 = sbr.rel (%p278) target = $region48
      $region47: #{tpu_custom_call.1} parent=5 // pred_region
        // Predicated region
        $region49: #{tpu_custom_call.1} parent=47 // pred_check
          %p281 = pneg %p38
        $region50: #{tpu_custom_call.1} parent=47 // pred_check_branch
          %283 = sbr.rel (%p281) target = $region52
        $region51: #{tpu_custom_call.1} parent=47 // pred_region
          %s284 = smul.u32 32, %s18
          %p285 = scmp.lt.s32.totalorder %s284, 63
          %s286 = scalar_select %p285, %s284, 63
          %s287 = smul.addr %s286, 8
          %s288 = scalar_lea.vmem %s0, %s287
          %s289 = smul.u32 32, %s18
        $region52: #{tpu_custom_call.1} parent=47 // pred_fallthru
          _
      $region48: #{tpu_custom_call.1} parent=5 // pred_fallthru
        _
      %p290 = scmp.le.s32.totalorder 1, %s18
      %p291 = scmp.lt.s32.totalorder %s18, 3
      %p292 = pnand %p290, %p291
      %p293 = pneg %p292
      // Predicated region
      $region53: #{tpu_custom_call.1} parent=5 // pred_check
        _
      $region54: #{tpu_custom_call.1} parent=5 // pred_check_branch
        %295 = sbr.rel (%p292) target = $region56
      $region55: #{tpu_custom_call.1} parent=5 // pred_region
        %s296 = ssub.s32 %s18, 1
        %s297 = smul.u32 32, %s23
        %p298 = scmp.lt.s32.totalorder %s297, 63
        %s299 = scalar_select %p298, %s297, 63
        %s300 = smul.addr %s299, 8
        %s301 = scalar_lea.vmem %s0, %s300
        %p302 = pneg %p44
        %p303 = pneg %p41
        %p304 = pneg %p65
        %p305 = pneg %p62
        %p306 = pneg %p86
        %p307 = pneg %p83
        %p308 = pneg %p107
        %p309 = pneg %p104
        %p310 = pneg %p128
        %p311 = pneg %p125
        %p312 = pneg %p149
        %p313 = pneg %p146
        %p314 = pneg %p170
        %p315 = pneg %p167
        %p316 = pneg %p191
        %p317 = pneg %p188
        %p318 = pneg %p212
        %p319 = pneg %p209
        %p320 = pneg %p238
        %p321 = pneg %p235
        %s322 = sand.u32 %s225, 1
        %s323 = scalar_lea.sflag [#allocation3], %s322
        %s324 = sand.u32 %s225, 1
        %s325 = smul.addr %s324, 256
        %s326 = scalar_lea.vmem [#allocation2], %s325
        %s327 = smul.u32 32, %s23
        %p328 = scmp.lt.s32.totalorder %s327, 63
        %s329 = scalar_select %p328, %s327, 63
        %s330 = smul.addr %s329, 8
        %s331 = scalar_lea.vmem %s0, %s330
        %s332 = smul.u32 32, %s23
        %s333 = smul.u32 32, %s23
        %v334 = vld [vmem:[%s331] sm:$0xff]
        %v335 = vld [vmem:[%s331 + $0x8] sm:$0xff]
        %v336 = vld [vmem:[%s331 + $0x10] sm:$0xff]
        %v337 = vld [vmem:[%s331 + $0x18] sm:$0xff]
        %v338 = vld [vmem:[%s331 + $0x20] sm:$0xff]
        %v339 = vld [vmem:[%s331 + $0x28] sm:$0xff]
        %v340 = vld [vmem:[%s331 + $0x30] sm:$0xff]
        %v341 = vld [vmem:[%s331 + $0x38] sm:$0xff]
        %v342 = vld [vmem:[%s331 + $0x40] sm:$0xff]
        %v343 = vld [vmem:[%s331 + $0x48] sm:$0xff]
        %v344 = vld [vmem:[%s331 + $0x50] sm:$0xff]
        %v345 = vld [vmem:[%s331 + $0x58] sm:$0xff]
        %v346 = vld [vmem:[%s331 + $0x60] sm:$0xff]
        %v347 = vld [vmem:[%s331 + $0x68] sm:$0xff]
        %v348 = vld [vmem:[%s331 + $0x70] sm:$0xff]
        %v349 = vld [vmem:[%s331 + $0x78] sm:$0xff]
        %v350 = vld [vmem:[%s331 + $0x80] sm:$0xff]
        %v351 = vld [vmem:[%s331 + $0x88] sm:$0xff]
        %v352 = vld [vmem:[%s331 + $0x90] sm:$0xff]
        %v353 = vld [vmem:[%s331 + $0x98] sm:$0xff]
        %v354 = vld [vmem:[%s331 + $0xa0] sm:$0xff]
        %v355 = vld [vmem:[%s331 + $0xa8] sm:$0xff]
        %v356 = vld [vmem:[%s331 + $0xb0] sm:$0xff]
        %v357 = vld [vmem:[%s331 + $0xb8] sm:$0xff]
        %v358 = vld [vmem:[%s331 + $0xc0] sm:$0xff]
        %v359 = vld [vmem:[%s331 + $0xc8] sm:$0xff]
        %v360 = vld [vmem:[%s331 + $0xd0] sm:$0xff]
        %v361 = vld [vmem:[%s331 + $0xd8] sm:$0xff]
        %v362 = vld [vmem:[%s331 + $0xe0] sm:$0xff]
        %v363 = vld [vmem:[%s331 + $0xe8] sm:$0xff]
        %v364 = vld [vmem:[%s331 + $0xf0] sm:$0xff]
        %v365 = vld [vmem:[%s331 + $0xf8] sm:$0xff]
        %v366 = vld [vmem:[%s1] sm:$0xff]
        %v367 = vld [vmem:[%s1 + $0x8] sm:$0x3]
        %v368 = vld [vmem:[%s2] sm:$0x1]
        %v370 = vperm.slane %v368, 0
        %vm372 = vcmask 80896
        %v374 = vsel %vm372, %v334, 0
        %v377 = vsel %vm372, %v335, 0
        %v380 = vsel %vm372, %v336, 0
        %v383 = vsel %vm372, %v337, 0
        %v386 = vsel %vm372, %v338, 0
        %v389 = vsel %vm372, %v339, 0
        %v392 = vsel %vm372, %v340, 0
        %v395 = vsel %vm372, %v341, 0
        %v398 = vsel %vm372, %v342, 0
        %v401 = vsel %vm372, %v343, 0
        %v404 = vsel %vm372, %v344, 0
        %v407 = vsel %vm372, %v345, 0
        %v410 = vsel %vm372, %v346, 0
        %v413 = vsel %vm372, %v347, 0
        %v416 = vsel %vm372, %v348, 0
        %v419 = vsel %vm372, %v349, 0
        %v422 = vsel %vm372, %v350, 0
        %v425 = vsel %vm372, %v351, 0
        %v428 = vsel %vm372, %v352, 0
        %v431 = vsel %vm372, %v353, 0
        %v434 = vsel %vm372, %v354, 0
        %v437 = vsel %vm372, %v355, 0
        %v440 = vsel %vm372, %v356, 0
        %v443 = vsel %vm372, %v357, 0
        %v446 = vsel %vm372, %v358, 0
        %v449 = vsel %vm372, %v359, 0
        %v452 = vsel %vm372, %v360, 0
        %v455 = vsel %vm372, %v361, 0
        %v458 = vsel %vm372, %v362, 0
        %v461 = vsel %vm372, %v363, 0
        %v464 = vsel %vm372, %v364, 0
        %v467 = vsel %vm372, %v365, 0
        %vm469 = vcmask 1041408
        %v471 = vsel %vm469, %v367, 0
        %473 = vmatpush.msra.mxu0 0.0
        %474 = vmatpush.msra.mxu0 0.0
        %475 = vmatpush.msra.mxu0 0.0
        %476 = vmatpush.msra.mxu0 0.0
        %477 = vmatpush.msra.mxu0 0.0
        %478 = vmatpush.msra.mxu0 0.0
        %479 = vmatpush.msra.mxu0 0.0
        %480 = vmatpush.msra.mxu0 0.0
        %481 = vmatpush.msra.mxu0 0.0
        %482 = vmatpush.msra.mxu0 0.0
        %483 = vmatpush.msra.mxu0 0.0
        %484 = vmatpush.msra.mxu0 0.0
        %485 = vmatpush.msra.mxu0 0.0
        %486 = vmatpush.msra.mxu0 0.0
        %487 = vmatpush.msra.mxu0 %v471
        %488 = vmatpush.msra.mxu0 %v366
        %489 = vmatmul.f32.gmra.mxu0 %v374
        %v490 = vpop.f32.mrf.mxu0
        %v491 = vadd.f32 %v370, %v490
        %492 = vmatmul.f32.gmra.mxu0 %v377
        %v493 = vpop.f32.mrf.mxu0
        %v494 = vadd.f32 %v370, %v493
        %495 = vmatmul.f32.gmra.mxu0 %v380
        %v496 = vpop.f32.mrf.mxu0
        %v497 = vadd.f32 %v370, %v496
        %498 = vmatmul.f32.gmra.mxu0 %v383
        %v499 = vpop.f32.mrf.mxu0
        %v500 = vadd.f32 %v370, %v499
        %501 = vmatmul.f32.gmra.mxu0 %v386
        %v502 = vpop.f32.mrf.mxu0
        %v503 = vadd.f32 %v370, %v502
        %504 = vmatmul.f32.gmra.mxu0 %v389
        %v505 = vpop.f32.mrf.mxu0
        %v506 = vadd.f32 %v370, %v505
        %507 = vmatmul.f32.gmra.mxu0 %v392
        %v508 = vpop.f32.mrf.mxu0
        %v509 = vadd.f32 %v370, %v508
        %510 = vmatmul.f32.gmra.mxu0 %v395
        %v511 = vpop.f32.mrf.mxu0
        %v512 = vadd.f32 %v370, %v511
        %513 = vmatmul.f32.gmra.mxu0 %v398
        %v514 = vpop.f32.mrf.mxu0
        %v515 = vadd.f32 %v370, %v514
        %516 = vmatmul.f32.gmra.mxu0 %v401
        %v517 = vpop.f32.mrf.mxu0
        %v518 = vadd.f32 %v370, %v517
        %519 = vmatmul.f32.gmra.mxu0 %v404
        %v520 = vpop.f32.mrf.mxu0
        %v521 = vadd.f32 %v370, %v520
        %522 = vmatmul.f32.gmra.mxu0 %v407
        %v523 = vpop.f32.mrf.mxu0
        %v524 = vadd.f32 %v370, %v523
        %525 = vmatmul.f32.gmra.mxu0 %v410
        %v526 = vpop.f32.mrf.mxu0
        %v527 = vadd.f32 %v370, %v526
        %528 = vmatmul.f32.gmra.mxu0 %v413
        %v529 = vpop.f32.mrf.mxu0
        %v530 = vadd.f32 %v370, %v529
        %531 = vmatmul.f32.gmra.mxu0 %v416
        %v532 = vpop.f32.mrf.mxu0
        %v533 = vadd.f32 %v370, %v532
        %534 = vmatmul.f32.gmra.mxu0 %v419
        %v535 = vpop.f32.mrf.mxu0
        %v536 = vadd.f32 %v370, %v535
        %537 = vmatmul.f32.gmra.mxu0 %v422
        %v538 = vpop.f32.mrf.mxu0
        %v539 = vadd.f32 %v370, %v538
        %540 = vmatmul.f32.gmra.mxu0 %v425
        %v541 = vpop.f32.mrf.mxu0
        %v542 = vadd.f32 %v370, %v541
        %543 = vmatmul.f32.gmra.mxu0 %v428
        %v544 = vpop.f32.mrf.mxu0
        %v545 = vadd.f32 %v370, %v544
        %546 = vmatmul.f32.gmra.mxu0 %v431
        %v547 = vpop.f32.mrf.mxu0
        %v548 = vadd.f32 %v370, %v547
        %549 = vmatmul.f32.gmra.mxu0 %v434
        %v550 = vpop.f32.mrf.mxu0
        %v551 = vadd.f32 %v370, %v550
        %552 = vmatmul.f32.gmra.mxu0 %v437
        %v553 = vpop.f32.mrf.mxu0
        %v554 = vadd.f32 %v370, %v553
        %555 = vmatmul.f32.gmra.mxu0 %v440
        %v556 = vpop.f32.mrf.mxu0
        %v557 = vadd.f32 %v370, %v556
        %558 = vmatmul.f32.gmra.mxu0 %v443
        %v559 = vpop.f32.mrf.mxu0
        %v560 = vadd.f32 %v370, %v559
        %561 = vmatmul.f32.gmra.mxu0 %v446
        %v562 = vpop.f32.mrf.mxu0
        %v563 = vadd.f32 %v370, %v562
        %564 = vmatmul.f32.gmra.mxu0 %v449
        %v565 = vpop.f32.mrf.mxu0
        %v566 = vadd.f32 %v370, %v565
        %567 = vmatmul.f32.gmra.mxu0 %v452
        %v568 = vpop.f32.mrf.mxu0
        %v569 = vadd.f32 %v370, %v568
        %570 = vmatmul.f32.gmra.mxu0 %v455
        %v571 = vpop.f32.mrf.mxu0
        %v572 = vadd.f32 %v370, %v571
        %573 = vmatmul.f32.gmra.mxu0 %v458
        %v574 = vpop.f32.mrf.mxu0
        %v575 = vadd.f32 %v370, %v574
        %576 = vmatmul.f32.gmra.mxu0 %v461
        %v577 = vpop.f32.mrf.mxu0
        %v578 = vadd.f32 %v370, %v577
        %579 = vmatmul.f32.gmra.mxu0 %v464
        %v580 = vpop.f32.mrf.mxu0
        %v581 = vadd.f32 %v370, %v580
        %582 = vmatmul.f32.gmra.mxu0 %v467
        %v583 = vpop.f32.mrf.mxu0
        %v584 = vadd.f32 %v370, %v583
        %585 = vdwg.mxu0
        %v586 = vmul.f32 %v491, 0.01
        %v587 = vmul.f32 %v494, 0.01
        %v588 = vmul.f32 %v497, 0.01
        %v589 = vmul.f32 %v500, 0.01
        %v590 = vmul.f32 %v503, 0.01
        %v591 = vmul.f32 %v506, 0.01
        %v592 = vmul.f32 %v509, 0.01
        %v593 = vmul.f32 %v512, 0.01
        %v594 = vmul.f32 %v515, 0.01
        %v595 = vmul.f32 %v518, 0.01
        %v596 = vmul.f32 %v521, 0.01
        %v597 = vmul.f32 %v524, 0.01
        %v598 = vmul.f32 %v527, 0.01
        %v599 = vmul.f32 %v530, 0.01
        %v600 = vmul.f32 %v533, 0.01
        %v601 = vmul.f32 %v536, 0.01
        %v602 = vmul.f32 %v539, 0.01
        %v603 = vmul.f32 %v542, 0.01
        %v604 = vmul.f32 %v545, 0.01
        %v605 = vmul.f32 %v548, 0.01
        %v606 = vmul.f32 %v551, 0.01
        %v607 = vmul.f32 %v554, 0.01
        %v608 = vmul.f32 %v557, 0.01
        %v609 = vmul.f32 %v560, 0.01
        %v610 = vmul.f32 %v563, 0.01
        %v611 = vmul.f32 %v566, 0.01
        %v612 = vmul.f32 %v569, 0.01
        %v613 = vmul.f32 %v572, 0.01
        %v614 = vmul.f32 %v575, 0.01
        %v615 = vmul.f32 %v578, 0.01
        %v616 = vmul.f32 %v581, 0.01
        %v617 = vmul.f32 %v584, 0.01
        %v618 = vmax.f32 %v491, %v586
        %v619 = vmax.f32 %v494, %v587
        %v620 = vmax.f32 %v497, %v588
        %v621 = vmax.f32 %v500, %v589
        %v622 = vmax.f32 %v503, %v590
        %v623 = vmax.f32 %v506, %v591
        %v624 = vmax.f32 %v509, %v592
        %v625 = vmax.f32 %v512, %v593
        %v626 = vmax.f32 %v515, %v594
        %v627 = vmax.f32 %v518, %v595
        %v628 = vmax.f32 %v521, %v596
        %v629 = vmax.f32 %v524, %v597
        %v630 = vmax.f32 %v527, %v598
        %v631 = vmax.f32 %v530, %v599
        %v632 = vmax.f32 %v533, %v600
        %v633 = vmax.f32 %v536, %v601
        %v634 = vmax.f32 %v539, %v602
        %v635 = vmax.f32 %v542, %v603
        %v636 = vmax.f32 %v545, %v604
        %v637 = vmax.f32 %v548, %v605
        %v638 = vmax.f32 %v551, %v606
        %v639 = vmax.f32 %v554, %v607
        %v640 = vmax.f32 %v557, %v608
        %v641 = vmax.f32 %v560, %v609
        %v642 = vmax.f32 %v563, %v610
        %v643 = vmax.f32 %v566, %v611
        %v644 = vmax.f32 %v569, %v612
        %v645 = vmax.f32 %v572, %v613
        %v646 = vmax.f32 %v575, %v614
        %v647 = vmax.f32 %v578, %v615
        %v648 = vmax.f32 %v581, %v616
        %v649 = vmax.f32 %v584, %v617
        %v650 = vld [vmem:[%s3] sm:$0xff]
        %v651 = vld [vmem:[%s3 + $0x8] sm:$0xff]
        %v652 = vld [vmem:[%s3 + $0x10] sm:$0xff]
        %v653 = vld [vmem:[%s3 + $0x18] sm:$0xff]
        %v654 = vld [vmem:[%s3 + $0x20] sm:$0xff]
        %v655 = vld [vmem:[%s3 + $0x28] sm:$0xff]
        %v656 = vld [vmem:[%s3 + $0x30] sm:$0xff]
        %v657 = vld [vmem:[%s3 + $0x38] sm:$0xff]
        %v658 = vld [vmem:[%s3 + $0x40] sm:$0xff]
        %v659 = vld [vmem:[%s3 + $0x48] sm:$0xff]
        %v660 = vld [vmem:[%s3 + $0x50] sm:$0xff]
        %v661 = vld [vmem:[%s3 + $0x58] sm:$0xff]
        %v662 = vld [vmem:[%s3 + $0x60] sm:$0xff]
        %v663 = vld [vmem:[%s3 + $0x68] sm:$0xff]
        %v664 = vld [vmem:[%s3 + $0x70] sm:$0xff]
        %v665 = vld [vmem:[%s3 + $0x78] sm:$0xff]
        %v666 = vld [vmem:[%s4] sm:$0x1]
        %v668 = vperm.slane %v666, 0
        %670 = vmatpush.msra.mxu0 %v665
        %671 = vmatpush.msra.mxu0 %v664
        %672 = vmatpush.msra.mxu0 %v663
        %673 = vmatpush.msra.mxu0 %v662
        %674 = vmatpush.msra.mxu0 %v661
        %675 = vmatpush.msra.mxu0 %v660
        %676 = vmatpush.msra.mxu0 %v659
        %677 = vmatpush.msra.mxu0 %v658
        %678 = vmatpush.msra.mxu0 %v657
        %679 = vmatpush.msra.mxu0 %v656
        %680 = vmatpush.msra.mxu0 %v655
        %681 = vmatpush.msra.mxu0 %v654
        %682 = vmatpush.msra.mxu0 %v653
        %683 = vmatpush.msra.mxu0 %v652
        %684 = vmatpush.msra.mxu0 %v651
        %685 = vmatpush.msra.mxu0 %v650
        %686 = vmatmul.f32.gmra.mxu0 %v618
        %v687 = vpop.f32.mrf.mxu0
        %v688 = vadd.f32 %v668, %v687
        %689 = vmatmul.f32.gmra.mxu0 %v619
        %v690 = vpop.f32.mrf.mxu0
        %v691 = vadd.f32 %v668, %v690
        %692 = vmatmul.f32.gmra.mxu0 %v620
        %v693 = vpop.f32.mrf.mxu0
        %v694 = vadd.f32 %v668, %v693
        %695 = vmatmul.f32.gmra.mxu0 %v621
        %v696 = vpop.f32.mrf.mxu0
        %v697 = vadd.f32 %v668, %v696
        %698 = vmatmul.f32.gmra.mxu0 %v622
        %v699 = vpop.f32.mrf.mxu0
        %v700 = vadd.f32 %v668, %v699
        %701 = vmatmul.f32.gmra.mxu0 %v623
        %v702 = vpop.f32.mrf.mxu0
        %v703 = vadd.f32 %v668, %v702
        %704 = vmatmul.f32.gmra.mxu0 %v624
        %v705 = vpop.f32.mrf.mxu0
        %v706 = vadd.f32 %v668, %v705
        %707 = vmatmul.f32.gmra.mxu0 %v625
        %v708 = vpop.f32.mrf.mxu0
        %v709 = vadd.f32 %v668, %v708
        %710 = vmatmul.f32.gmra.mxu0 %v626
        %v711 = vpop.f32.mrf.mxu0
        %v712 = vadd.f32 %v668, %v711
        %713 = vmatmul.f32.gmra.mxu0 %v627
        %v714 = vpop.f32.mrf.mxu0
        %v715 = vadd.f32 %v668, %v714
        %716 = vmatmul.f32.gmra.mxu0 %v628
        %v717 = vpop.f32.mrf.mxu0
        %v718 = vadd.f32 %v668, %v717
        %719 = vmatmul.f32.gmra.mxu0 %v629
        %v720 = vpop.f32.mrf.mxu0
        %v721 = vadd.f32 %v668, %v720
        %722 = vmatmul.f32.gmra.mxu0 %v630
        %v723 = vpop.f32.mrf.mxu0
        %v724 = vadd.f32 %v668, %v723
        %725 = vmatmul.f32.gmra.mxu0 %v631
        %v726 = vpop.f32.mrf.mxu0
        %v727 = vadd.f32 %v668, %v726
        %728 = vmatmul.f32.gmra.mxu0 %v632
        %v729 = vpop.f32.mrf.mxu0
        %v730 = vadd.f32 %v668, %v729
        %731 = vmatmul.f32.gmra.mxu0 %v633
        %v732 = vpop.f32.mrf.mxu0
        %v733 = vadd.f32 %v668, %v732
        %734 = vmatmul.f32.gmra.mxu0 %v634
        %v735 = vpop.f32.mrf.mxu0
        %v736 = vadd.f32 %v668, %v735
        %737 = vmatmul.f32.gmra.mxu0 %v635
        %v738 = vpop.f32.mrf.mxu0
        %v739 = vadd.f32 %v668, %v738
        %740 = vmatmul.f32.gmra.mxu0 %v636
        %v741 = vpop.f32.mrf.mxu0
        %v742 = vadd.f32 %v668, %v741
        %743 = vmatmul.f32.gmra.mxu0 %v637
        %v744 = vpop.f32.mrf.mxu0
        %v745 = vadd.f32 %v668, %v744
        %746 = vmatmul.f32.gmra.mxu0 %v638
        %v747 = vpop.f32.mrf.mxu0
        %v748 = vadd.f32 %v668, %v747
        %749 = vmatmul.f32.gmra.mxu0 %v639
        %v750 = vpop.f32.mrf.mxu0
        %v751 = vadd.f32 %v668, %v750
        %752 = vmatmul.f32.gmra.mxu0 %v640
        %v753 = vpop.f32.mrf.mxu0
        %v754 = vadd.f32 %v668, %v753
        %755 = vmatmul.f32.gmra.mxu0 %v641
        %v756 = vpop.f32.mrf.mxu0
        %v757 = vadd.f32 %v668, %v756
        %758 = vmatmul.f32.gmra.mxu0 %v642
        %v759 = vpop.f32.mrf.mxu0
        %v760 = vadd.f32 %v668, %v759
        %761 = vmatmul.f32.gmra.mxu0 %v643
        %v762 = vpop.f32.mrf.mxu0
        %v763 = vadd.f32 %v668, %v762
        %764 = vmatmul.f32.gmra.mxu0 %v644
        %v765 = vpop.f32.mrf.mxu0
        %v766 = vadd.f32 %v668, %v765
        %767 = vmatmul.f32.gmra.mxu0 %v645
        %v768 = vpop.f32.mrf.mxu0
        %v769 = vadd.f32 %v668, %v768
        %770 = vmatmul.f32.gmra.mxu0 %v646
        %v771 = vpop.f32.mrf.mxu0
        %v772 = vadd.f32 %v668, %v771
        %773 = vmatmul.f32.gmra.mxu0 %v647
        %v774 = vpop.f32.mrf.mxu0
        %v775 = vadd.f32 %v668, %v774
        %776 = vmatmul.f32.gmra.mxu0 %v648
        %v777 = vpop.f32.mrf.mxu0
        %v778 = vadd.f32 %v668, %v777
        %779 = vmatmul.f32.gmra.mxu0 %v649
        %v780 = vpop.f32.mrf.mxu0
        %v781 = vadd.f32 %v668, %v780
        %782 = vdwg.mxu0
        %v783 = vmul.f32 %v688, 0.01
        %v784 = vmul.f32 %v691, 0.01
        %v785 = vmul.f32 %v694, 0.01
        %v786 = vmul.f32 %v697, 0.01
        %v787 = vmul.f32 %v700, 0.01
        %v788 = vmul.f32 %v703, 0.01
        %v789 = vmul.f32 %v706, 0.01
        %v790 = vmul.f32 %v709, 0.01
        %v791 = vmul.f32 %v712, 0.01
        %v792 = vmul.f32 %v715, 0.01
        %v793 = vmul.f32 %v718, 0.01
        %v794 = vmul.f32 %v721, 0.01
        %v795 = vmul.f32 %v724, 0.01
        %v796 = vmul.f32 %v727, 0.01
        %v797 = vmul.f32 %v730, 0.01
        %v798 = vmul.f32 %v733, 0.01
        %v799 = vmul.f32 %v736, 0.01
        %v800 = vmul.f32 %v739, 0.01
        %v801 = vmul.f32 %v742, 0.01
        %v802 = vmul.f32 %v745, 0.01
        %v803 = vmul.f32 %v748, 0.01
        %v804 = vmul.f32 %v751, 0.01
        %v805 = vmul.f32 %v754, 0.01
        %v806 = vmul.f32 %v757, 0.01
        %v807 = vmul.f32 %v760, 0.01
        %v808 = vmul.f32 %v763, 0.01
        %v809 = vmul.f32 %v766, 0.01
        %v810 = vmul.f32 %v769, 0.01
        %v811 = vmul.f32 %v772, 0.01
        %v812 = vmul.f32 %v775, 0.01
        %v813 = vmul.f32 %v778, 0.01
        %v814 = vmul.f32 %v781, 0.01
        %v815 = vmax.f32 %v688, %v783
        %v816 = vmax.f32 %v691, %v784
        %v817 = vmax.f32 %v694, %v785
        %v818 = vmax.f32 %v697, %v786
        %v819 = vmax.f32 %v700, %v787
        %v820 = vmax.f32 %v703, %v788
        %v821 = vmax.f32 %v706, %v789
        %v822 = vmax.f32 %v709, %v790
        %v823 = vmax.f32 %v712, %v791
        %v824 = vmax.f32 %v715, %v792
        %v825 = vmax.f32 %v718, %v793
        %v826 = vmax.f32 %v721, %v794
        %v827 = vmax.f32 %v724, %v795
        %v828 = vmax.f32 %v727, %v796
        %v829 = vmax.f32 %v730, %v797
        %v830 = vmax.f32 %v733, %v798
        %v831 = vmax.f32 %v736, %v799
        %v832 = vmax.f32 %v739, %v800
        %v833 = vmax.f32 %v742, %v801
        %v834 = vmax.f32 %v745, %v802
        %v835 = vmax.f32 %v748, %v803
        %v836 = vmax.f32 %v751, %v804
        %v837 = vmax.f32 %v754, %v805
        %v838 = vmax.f32 %v757, %v806
        %v839 = vmax.f32 %v760, %v807
        %v840 = vmax.f32 %v763, %v808
        %v841 = vmax.f32 %v766, %v809
        %v842 = vmax.f32 %v769, %v810
        %v843 = vmax.f32 %v772, %v811
        %v844 = vmax.f32 %v775, %v812
        %v845 = vmax.f32 %v778, %v813
        %v846 = vmax.f32 %v781, %v814
        %v847 = vld [vmem:[%s5] sm:$0xff]
        %v848 = vld [vmem:[%s5 + $0x8] sm:$0xff]
        %v849 = vld [vmem:[%s5 + $0x10] sm:$0xff]
        %v850 = vld [vmem:[%s5 + $0x18] sm:$0xff]
        %v851 = vld [vmem:[%s5 + $0x20] sm:$0xff]
        %v852 = vld [vmem:[%s5 + $0x28] sm:$0xff]
        %v853 = vld [vmem:[%s5 + $0x30] sm:$0xff]
        %v854 = vld [vmem:[%s5 + $0x38] sm:$0xff]
        %v855 = vld [vmem:[%s5 + $0x40] sm:$0xff]
        %v856 = vld [vmem:[%s5 + $0x48] sm:$0xff]
        %v857 = vld [vmem:[%s5 + $0x50] sm:$0xff]
        %v858 = vld [vmem:[%s5 + $0x58] sm:$0xff]
        %v859 = vld [vmem:[%s5 + $0x60] sm:$0xff]
        %v860 = vld [vmem:[%s5 + $0x68] sm:$0xff]
        %v861 = vld [vmem:[%s5 + $0x70] sm:$0xff]
        %v862 = vld [vmem:[%s5 + $0x78] sm:$0xff]
        %v863 = vld [vmem:[%s6] sm:$0x1]
        %v865 = vperm.slane %v863, 0
        %867 = vmatpush.msra.mxu0 %v862
        %868 = vmatpush.msra.mxu0 %v861
        %869 = vmatpush.msra.mxu0 %v860
        %870 = vmatpush.msra.mxu0 %v859
        %871 = vmatpush.msra.mxu0 %v858
        %872 = vmatpush.msra.mxu0 %v857
        %873 = vmatpush.msra.mxu0 %v856
        %874 = vmatpush.msra.mxu0 %v855
        %875 = vmatpush.msra.mxu0 %v854
        %876 = vmatpush.msra.mxu0 %v853
        %877 = vmatpush.msra.mxu0 %v852
        %878 = vmatpush.msra.mxu0 %v851
        %879 = vmatpush.msra.mxu0 %v850
        %880 = vmatpush.msra.mxu0 %v849
        %881 = vmatpush.msra.mxu0 %v848
        %882 = vmatpush.msra.mxu0 %v847
        %883 = vmatmul.f32.gmra.mxu0 %v815
        %v884 = vpop.f32.mrf.mxu0
        %v885 = vadd.f32 %v865, %v884
        %886 = vmatmul.f32.gmra.mxu0 %v816
        %v887 = vpop.f32.mrf.mxu0
        %v888 = vadd.f32 %v865, %v887
        %889 = vmatmul.f32.gmra.mxu0 %v817
        %v890 = vpop.f32.mrf.mxu0
        %v891 = vadd.f32 %v865, %v890
        %892 = vmatmul.f32.gmra.mxu0 %v818
        %v893 = vpop.f32.mrf.mxu0
        %v894 = vadd.f32 %v865, %v893
        %895 = vmatmul.f32.gmra.mxu0 %v819
        %v896 = vpop.f32.mrf.mxu0
        %v897 = vadd.f32 %v865, %v896
        %898 = vmatmul.f32.gmra.mxu0 %v820
        %v899 = vpop.f32.mrf.mxu0
        %v900 = vadd.f32 %v865, %v899
        %901 = vmatmul.f32.gmra.mxu0 %v821
        %v902 = vpop.f32.mrf.mxu0
        %v903 = vadd.f32 %v865, %v902
        %904 = vmatmul.f32.gmra.mxu0 %v822
        %v905 = vpop.f32.mrf.mxu0
        %v906 = vadd.f32 %v865, %v905
        %907 = vmatmul.f32.gmra.mxu0 %v823
        %v908 = vpop.f32.mrf.mxu0
        %v909 = vadd.f32 %v865, %v908
        %910 = vmatmul.f32.gmra.mxu0 %v824
        %v911 = vpop.f32.mrf.mxu0
        %v912 = vadd.f32 %v865, %v911
        %913 = vmatmul.f32.gmra.mxu0 %v825
        %v914 = vpop.f32.mrf.mxu0
        %v915 = vadd.f32 %v865, %v914
        %916 = vmatmul.f32.gmra.mxu0 %v826
        %v917 = vpop.f32.mrf.mxu0
        %v918 = vadd.f32 %v865, %v917
        %919 = vmatmul.f32.gmra.mxu0 %v827
        %v920 = vpop.f32.mrf.mxu0
        %v921 = vadd.f32 %v865, %v920
        %922 = vmatmul.f32.gmra.mxu0 %v828
        %v923 = vpop.f32.mrf.mxu0
        %v924 = vadd.f32 %v865, %v923
        %925 = vmatmul.f32.gmra.mxu0 %v829
        %v926 = vpop.f32.mrf.mxu0
        %v927 = vadd.f32 %v865, %v926
        %928 = vmatmul.f32.gmra.mxu0 %v830
        %v929 = vpop.f32.mrf.mxu0
        %v930 = vadd.f32 %v865, %v929
        %931 = vmatmul.f32.gmra.mxu0 %v831
        %v932 = vpop.f32.mrf.mxu0
        %v933 = vadd.f32 %v865, %v932
        %934 = vmatmul.f32.gmra.mxu0 %v832
        %v935 = vpop.f32.mrf.mxu0
        %v936 = vadd.f32 %v865, %v935
        %937 = vmatmul.f32.gmra.mxu0 %v833
        %v938 = vpop.f32.mrf.mxu0
        %v939 = vadd.f32 %v865, %v938
        %940 = vmatmul.f32.gmra.mxu0 %v834
        %v941 = vpop.f32.mrf.mxu0
        %v942 = vadd.f32 %v865, %v941
        %943 = vmatmul.f32.gmra.mxu0 %v835
        %v944 = vpop.f32.mrf.mxu0
        %v945 = vadd.f32 %v865, %v944
        %946 = vmatmul.f32.gmra.mxu0 %v836
        %v947 = vpop.f32.mrf.mxu0
        %v948 = vadd.f32 %v865, %v947
        %949 = vmatmul.f32.gmra.mxu0 %v837
        %v950 = vpop.f32.mrf.mxu0
        %v951 = vadd.f32 %v865, %v950
        %952 = vmatmul.f32.gmra.mxu0 %v838
        %v953 = vpop.f32.mrf.mxu0
        %v954 = vadd.f32 %v865, %v953
        %955 = vmatmul.f32.gmra.mxu0 %v839
        %v956 = vpop.f32.mrf.mxu0
        %v957 = vadd.f32 %v865, %v956
        %958 = vmatmul.f32.gmra.mxu0 %v840
        %v959 = vpop.f32.mrf.mxu0
        %v960 = vadd.f32 %v865, %v959
        %961 = vmatmul.f32.gmra.mxu0 %v841
        %v962 = vpop.f32.mrf.mxu0
        %v963 = vadd.f32 %v865, %v962
        %964 = vmatmul.f32.gmra.mxu0 %v842
        %v965 = vpop.f32.mrf.mxu0
        %v966 = vadd.f32 %v865, %v965
        %967 = vmatmul.f32.gmra.mxu0 %v843
        %v968 = vpop.f32.mrf.mxu0
        %v969 = vadd.f32 %v865, %v968
        %970 = vmatmul.f32.gmra.mxu0 %v844
        %v971 = vpop.f32.mrf.mxu0
        %v972 = vadd.f32 %v865, %v971
        %973 = vmatmul.f32.gmra.mxu0 %v845
        %v974 = vpop.f32.mrf.mxu0
        %v975 = vadd.f32 %v865, %v974
        %976 = vmatmul.f32.gmra.mxu0 %v846
        %v977 = vpop.f32.mrf.mxu0
        %v978 = vadd.f32 %v865, %v977
        %979 = vdwg.mxu0
        %v980 = vmul.f32 %v885, 0.01
        %v981 = vmul.f32 %v888, 0.01
        %v982 = vmul.f32 %v891, 0.01
        %v983 = vmul.f32 %v894, 0.01
        %v984 = vmul.f32 %v897, 0.01
        %v985 = vmul.f32 %v900, 0.01
        %v986 = vmul.f32 %v903, 0.01
        %v987 = vmul.f32 %v906, 0.01
        %v988 = vmul.f32 %v909, 0.01
        %v989 = vmul.f32 %v912, 0.01
        %v990 = vmul.f32 %v915, 0.01
        %v991 = vmul.f32 %v918, 0.01
        %v992 = vmul.f32 %v921, 0.01
        %v993 = vmul.f32 %v924, 0.01
        %v994 = vmul.f32 %v927, 0.01
        %v995 = vmul.f32 %v930, 0.01
        %v996 = vmul.f32 %v933, 0.01
        %v997 = vmul.f32 %v936, 0.01
        %v998 = vmul.f32 %v939, 0.01
        %v999 = vmul.f32 %v942, 0.01
        %v1000 = vmul.f32 %v945, 0.01
        %v1001 = vmul.f32 %v948, 0.01
        %v1002 = vmul.f32 %v951, 0.01
        %v1003 = vmul.f32 %v954, 0.01
        %v1004 = vmul.f32 %v957, 0.01
        %v1005 = vmul.f32 %v960, 0.01
        %v1006 = vmul.f32 %v963, 0.01
        %v1007 = vmul.f32 %v966, 0.01
        %v1008 = vmul.f32 %v969, 0.01
        %v1009 = vmul.f32 %v972, 0.01
        %v1010 = vmul.f32 %v975, 0.01
        %v1011 = vmul.f32 %v978, 0.01
        %v1012 = vmax.f32 %v885, %v980
        %v1013 = vmax.f32 %v888, %v981
        %v1014 = vmax.f32 %v891, %v982
        %v1015 = vmax.f32 %v894, %v983
        %v1016 = vmax.f32 %v897, %v984
        %v1017 = vmax.f32 %v900, %v985
        %v1018 = vmax.f32 %v903, %v986
        %v1019 = vmax.f32 %v906, %v987
        %v1020 = vmax.f32 %v909, %v988
        %v1021 = vmax.f32 %v912, %v989
        %v1022 = vmax.f32 %v915, %v990
        %v1023 = vmax.f32 %v918, %v991
        %v1024 = vmax.f32 %v921, %v992
        %v1025 = vmax.f32 %v924, %v993
        %v1026 = vmax.f32 %v927, %v994
        %v1027 = vmax.f32 %v930, %v995
        %v1028 = vmax.f32 %v933, %v996
        %v1029 = vmax.f32 %v936, %v997
        %v1030 = vmax.f32 %v939, %v998
        %v1031 = vmax.f32 %v942, %v999
        %v1032 = vmax.f32 %v945, %v1000
        %v1033 = vmax.f32 %v948, %v1001
        %v1034 = vmax.f32 %v951, %v1002
        %v1035 = vmax.f32 %v954, %v1003
        %v1036 = vmax.f32 %v957, %v1004
        %v1037 = vmax.f32 %v960, %v1005
        %v1038 = vmax.f32 %v963, %v1006
        %v1039 = vmax.f32 %v966, %v1007
        %v1040 = vmax.f32 %v969, %v1008
        %v1041 = vmax.f32 %v972, %v1009
        %v1042 = vmax.f32 %v975, %v1010
        %v1043 = vmax.f32 %v978, %v1011
        %v1044 = vld [vmem:[%s7] sm:$0xff]
        %v1045 = vld [vmem:[%s7 + $0x8] sm:$0xff]
        %v1046 = vld [vmem:[%s7 + $0x10] sm:$0xff]
        %v1047 = vld [vmem:[%s7 + $0x18] sm:$0xff]
        %v1048 = vld [vmem:[%s7 + $0x20] sm:$0xff]
        %v1049 = vld [vmem:[%s7 + $0x28] sm:$0xff]
        %v1050 = vld [vmem:[%s7 + $0x30] sm:$0xff]
        %v1051 = vld [vmem:[%s7 + $0x38] sm:$0xff]
        %v1052 = vld [vmem:[%s7 + $0x40] sm:$0xff]
        %v1053 = vld [vmem:[%s7 + $0x48] sm:$0xff]
        %v1054 = vld [vmem:[%s7 + $0x50] sm:$0xff]
        %v1055 = vld [vmem:[%s7 + $0x58] sm:$0xff]
        %v1056 = vld [vmem:[%s7 + $0x60] sm:$0xff]
        %v1057 = vld [vmem:[%s7 + $0x68] sm:$0xff]
        %v1058 = vld [vmem:[%s7 + $0x70] sm:$0xff]
        %v1059 = vld [vmem:[%s7 + $0x78] sm:$0xff]
        %v1060 = vld [vmem:[%s8] sm:$0x1]
        %v1062 = vperm.slane %v1060, 0
        %1064 = vmatpush.msra.mxu0 %v1059
        %1065 = vmatpush.msra.mxu0 %v1058
        %1066 = vmatpush.msra.mxu0 %v1057
        %1067 = vmatpush.msra.mxu0 %v1056
        %1068 = vmatpush.msra.mxu0 %v1055
        %1069 = vmatpush.msra.mxu0 %v1054
        %1070 = vmatpush.msra.mxu0 %v1053
        %1071 = vmatpush.msra.mxu0 %v1052
        %1072 = vmatpush.msra.mxu0 %v1051
        %1073 = vmatpush.msra.mxu0 %v1050
        %1074 = vmatpush.msra.mxu0 %v1049
        %1075 = vmatpush.msra.mxu0 %v1048
        %1076 = vmatpush.msra.mxu0 %v1047
        %1077 = vmatpush.msra.mxu0 %v1046
        %1078 = vmatpush.msra.mxu0 %v1045
        %1079 = vmatpush.msra.mxu0 %v1044
        %1080 = vmatmul.f32.gmra.mxu0 %v1012
        %v1081 = vpop.f32.mrf.mxu0
        %v1082 = vadd.f32 %v1062, %v1081
        %1083 = vmatmul.f32.gmra.mxu0 %v1013
        %v1084 = vpop.f32.mrf.mxu0
        %v1085 = vadd.f32 %v1062, %v1084
        %1086 = vmatmul.f32.gmra.mxu0 %v1014
        %v1087 = vpop.f32.mrf.mxu0
        %v1088 = vadd.f32 %v1062, %v1087
        %1089 = vmatmul.f32.gmra.mxu0 %v1015
        %v1090 = vpop.f32.mrf.mxu0
        %v1091 = vadd.f32 %v1062, %v1090
        %1092 = vmatmul.f32.gmra.mxu0 %v1016
        %v1093 = vpop.f32.mrf.mxu0
        %v1094 = vadd.f32 %v1062, %v1093
        %1095 = vmatmul.f32.gmra.mxu0 %v1017
        %v1096 = vpop.f32.mrf.mxu0
        %v1097 = vadd.f32 %v1062, %v1096
        %1098 = vmatmul.f32.gmra.mxu0 %v1018
        %v1099 = vpop.f32.mrf.mxu0
        %v1100 = vadd.f32 %v1062, %v1099
        %1101 = vmatmul.f32.gmra.mxu0 %v1019
        %v1102 = vpop.f32.mrf.mxu0
        %v1103 = vadd.f32 %v1062, %v1102
        %1104 = vmatmul.f32.gmra.mxu0 %v1020
        %v1105 = vpop.f32.mrf.mxu0
        %v1106 = vadd.f32 %v1062, %v1105
        %1107 = vmatmul.f32.gmra.mxu0 %v1021
        %v1108 = vpop.f32.mrf.mxu0
        %v1109 = vadd.f32 %v1062, %v1108
        %1110 = vmatmul.f32.gmra.mxu0 %v1022
        %v1111 = vpop.f32.mrf.mxu0
        %v1112 = vadd.f32 %v1062, %v1111
        %1113 = vmatmul.f32.gmra.mxu0 %v1023
        %v1114 = vpop.f32.mrf.mxu0
        %v1115 = vadd.f32 %v1062, %v1114
        %1116 = vmatmul.f32.gmra.mxu0 %v1024
        %v1117 = vpop.f32.mrf.mxu0
        %v1118 = vadd.f32 %v1062, %v1117
        %1119 = vmatmul.f32.gmra.mxu0 %v1025
        %v1120 = vpop.f32.mrf.mxu0
        %v1121 = vadd.f32 %v1062, %v1120
        %1122 = vmatmul.f32.gmra.mxu0 %v1026
        %v1123 = vpop.f32.mrf.mxu0
        %v1124 = vadd.f32 %v1062, %v1123
        %1125 = vmatmul.f32.gmra.mxu0 %v1027
        %v1126 = vpop.f32.mrf.mxu0
        %v1127 = vadd.f32 %v1062, %v1126
        %1128 = vmatmul.f32.gmra.mxu0 %v1028
        %v1129 = vpop.f32.mrf.mxu0
        %v1130 = vadd.f32 %v1062, %v1129
        %1131 = vmatmul.f32.gmra.mxu0 %v1029
        %v1132 = vpop.f32.mrf.mxu0
        %v1133 = vadd.f32 %v1062, %v1132
        %1134 = vmatmul.f32.gmra.mxu0 %v1030
        %v1135 = vpop.f32.mrf.mxu0
        %v1136 = vadd.f32 %v1062, %v1135
        %1137 = vmatmul.f32.gmra.mxu0 %v1031
        %v1138 = vpop.f32.mrf.mxu0
        %v1139 = vadd.f32 %v1062, %v1138
        %1140 = vmatmul.f32.gmra.mxu0 %v1032
        %v1141 = vpop.f32.mrf.mxu0
        %v1142 = vadd.f32 %v1062, %v1141
        %1143 = vmatmul.f32.gmra.mxu0 %v1033
        %v1144 = vpop.f32.mrf.mxu0
        %v1145 = vadd.f32 %v1062, %v1144
        %1146 = vmatmul.f32.gmra.mxu0 %v1034
        %v1147 = vpop.f32.mrf.mxu0
        %v1148 = vadd.f32 %v1062, %v1147
        %1149 = vmatmul.f32.gmra.mxu0 %v1035
        %v1150 = vpop.f32.mrf.mxu0
        %v1151 = vadd.f32 %v1062, %v1150
        %1152 = vmatmul.f32.gmra.mxu0 %v1036
        %v1153 = vpop.f32.mrf.mxu0
        %v1154 = vadd.f32 %v1062, %v1153
        %1155 = vmatmul.f32.gmra.mxu0 %v1037
        %v1156 = vpop.f32.mrf.mxu0
        %v1157 = vadd.f32 %v1062, %v1156
        %1158 = vmatmul.f32.gmra.mxu0 %v1038
        %v1159 = vpop.f32.mrf.mxu0
        %v1160 = vadd.f32 %v1062, %v1159
        %1161 = vmatmul.f32.gmra.mxu0 %v1039
        %v1162 = vpop.f32.mrf.mxu0
        %v1163 = vadd.f32 %v1062, %v1162
        %1164 = vmatmul.f32.gmra.mxu0 %v1040
        %v1165 = vpop.f32.mrf.mxu0
        %v1166 = vadd.f32 %v1062, %v1165
        %1167 = vmatmul.f32.gmra.mxu0 %v1041
        %v1168 = vpop.f32.mrf.mxu0
        %v1169 = vadd.f32 %v1062, %v1168
        %1170 = vmatmul.f32.gmra.mxu0 %v1042
        %v1171 = vpop.f32.mrf.mxu0
        %v1172 = vadd.f32 %v1062, %v1171
        %1173 = vmatmul.f32.gmra.mxu0 %v1043
        %v1174 = vpop.f32.mrf.mxu0
        %v1175 = vadd.f32 %v1062, %v1174
        %1176 = vdwg.mxu0
        %1177 = vst [vmem:[%s326] sm:$0xff] %v1082
        %1178 = vst [vmem:[%s326 + $0x8] sm:$0xff] %v1085
        %1179 = vst [vmem:[%s326 + $0x10] sm:$0xff] %v1088
        %1180 = vst [vmem:[%s326 + $0x18] sm:$0xff] %v1091
        %1181 = vst [vmem:[%s326 + $0x20] sm:$0xff] %v1094
        %1182 = vst [vmem:[%s326 + $0x28] sm:$0xff] %v1097
        %1183 = vst [vmem:[%s326 + $0x30] sm:$0xff] %v1100
        %1184 = vst [vmem:[%s326 + $0x38] sm:$0xff] %v1103
        %1185 = vst [vmem:[%s326 + $0x40] sm:$0xff] %v1106
        %1186 = vst [vmem:[%s326 + $0x48] sm:$0xff] %v1109
        %1187 = vst [vmem:[%s326 + $0x50] sm:$0xff] %v1112
        %1188 = vst [vmem:[%s326 + $0x58] sm:$0xff] %v1115
        %1189 = vst [vmem:[%s326 + $0x60] sm:$0xff] %v1118
        %1190 = vst [vmem:[%s326 + $0x68] sm:$0xff] %v1121
        %1191 = vst [vmem:[%s326 + $0x70] sm:$0xff] %v1124
        %1192 = vst [vmem:[%s326 + $0x78] sm:$0xff] %v1127
        %1193 = vst [vmem:[%s326 + $0x80] sm:$0xff] %v1130
        %1194 = vst [vmem:[%s326 + $0x88] sm:$0xff] %v1133
        %1195 = vst [vmem:[%s326 + $0x90] sm:$0xff] %v1136
        %1196 = vst [vmem:[%s326 + $0x98] sm:$0xff] %v1139
        %1197 = vst [vmem:[%s326 + $0xa0] sm:$0xff] %v1142
        %1198 = vst [vmem:[%s326 + $0xa8] sm:$0xff] %v1145
        %1199 = vst [vmem:[%s326 + $0xb0] sm:$0xff] %v1148
        %1200 = vst [vmem:[%s326 + $0xb8] sm:$0xff] %v1151
        %1201 = vst [vmem:[%s326 + $0xc0] sm:$0xff] %v1154
        %1202 = vst [vmem:[%s326 + $0xc8] sm:$0xff] %v1157
        %1203 = vst [vmem:[%s326 + $0xd0] sm:$0xff] %v1160
        %1204 = vst [vmem:[%s326 + $0xd8] sm:$0xff] %v1163
        %1205 = vst [vmem:[%s326 + $0xe0] sm:$0xff] %v1166
        %1206 = vst [vmem:[%s326 + $0xe8] sm:$0xff] %v1169
        %1207 = vst [vmem:[%s326 + $0xf0] sm:$0xff] %v1172
        %1208 = vst [vmem:[%s326 + $0xf8] sm:$0xff] %v1175
        %s1209 = sand.u32 %s225, 1
        %s1210 = scalar_lea.sflag [#allocation3], %s1209
        %s1211 = sand.u32 %s225, 1
        %s1212 = smul.addr %s1211, 256
        %s1213 = scalar_lea.vmem [#allocation2], %s1212
        // Predicated region
        $region57: #{tpu_custom_call.1} parent=55 // pred_check
          %p1214 = pneg %p235
        $region58: #{tpu_custom_call.1} parent=55 // pred_check_branch
          %1216 = sbr.rel (%p1214) target = $region60
        $region59: #{tpu_custom_call.1} parent=55 // pred_region
          %s1217 = smul.u32 32, %s23
          %1219 = vsyncadd %s1210, 0
          %s1220 = smul.addr %s1217, 8
          %s1221 = scalar_lea.hbm %s9, %s1220
          %s1222 = sshll.u32 %s1213, 4
          %s1223 = int_to_ptr.vmem [resolvable:$true] %s1222
          %s1224 = sshll.u32 %s1221, 4
          %s1225 = int_to_ptr.hbm [resolvable:$true] %s1224
          %1230 = dma.vmem_to_hbm [thread:$0]  %s1223, 4096, %s1225, %s1210, 128, 128, 8
        $region60: #{tpu_custom_call.1} parent=55 // pred_fallthru
          _
      $region56: #{tpu_custom_call.1} parent=5 // pred_fallthru
        _
      %p1231 = scmp.le.s32.totalorder 2, %s18
      // Predicated region
      $region61: #{tpu_custom_call.1} parent=5 // pred_check
        %p1232 = pneg %p1231
      $region62: #{tpu_custom_call.1} parent=5 // pred_check_branch
        %1234 = sbr.rel (%p1232) target = $region64
      $region63: #{tpu_custom_call.1} parent=5 // pred_region
        %s1235 = ssub.s32 %s18, 2
        // Predicated region
        $region65: #{tpu_custom_call.1} parent=63 // pred_check
          %p1236 = pneg %p241
        $region66: #{tpu_custom_call.1} parent=63 // pred_check_branch
          %1238 = sbr.rel (%p1236) target = $region68
        $region67: #{tpu_custom_call.1} parent=63 // pred_region
          %s1239 = sand.u32 %s226, 1
          %s1240 = scalar_lea.sflag [#allocation3], %s1239
          %s1241 = sand.u32 %s226, 1
          %s1242 = smul.addr %s1241, 256
          %s1243 = scalar_lea.vmem [#allocation2], %s1242
          %1245 = dma.done %s1240, 4096
        $region68: #{tpu_custom_call.1} parent=63 // pred_fallthru
          _
      $region64: #{tpu_custom_call.1} parent=5 // pred_fallthru
        _
    $region6: #{tpu_custom_call.1} parent=1 // loop_footer
      %s22 = sadd.s32 1, %s18
    $region7: #{tpu_custom_call.1} parent=1 // loop_footer_branch
      %17 = sbr.rel target = $region3
    $region8: #{tpu_custom_call.1} parent=1 // loop_exit
      _
    %1246 = vsyncpa [#allocation3], 1
    %s1247 = scalar_lea.sflag [#allocation3], 1
    %1248 = vsyncpa %s1247, 1

</llo_original>
